<compile_context>
chip_gen: v5e
topology: v5e:2x2
jax: 0.10.0
libtpu: 0.0.40
codegen_flags: <defaults>
</compile_context>

<pallas_src>
import jax
import jax.numpy as jnp
from jax.experimental import pallas as pl
from jax.experimental.pallas import tpu as pltpu


def rnn_mlp_kernel(x_ref,                        # (B, T, D)   batch-first input
                   wih0_ref, b0_ref,             # (D, H), (1, H)   layer-0 input proj
                   whh0_ref,                     # (H, H)           layer-0 recurrent
                   w1cat_ref, b1_ref,            # (2H, H), (1, H)  layer-1 fused weights
                   wm1_ref, bm1_ref,             # (H, M), (1, M)   MLP linear 1
                   wm2_ref, bm2_ref,             # (M, C), (1, C)   MLP linear 2
                   out_ref):                     # (B, C)
    B, T, D = x_ref.shape
    H = whh0_ref.shape[0]

    # --- (1) layer-0 input projection over ALL timesteps: one batched matmul,
    #     bias folded in once.  Result (B, T, H).
    x = x_ref[...]
    xproj = (jnp.dot(x.reshape(B * T, D), wih0_ref[...],
                     preferred_element_type=jnp.float32)
             + b0_ref[...]).reshape(B, T, H)

    # Hoist weight loads and the layer-1 bias broadcast out of the loop
    # (JAX does not CSE broadcast_in_dim across unrolled iterations).
    whh0 = whh0_ref[...]
    w1cat = w1cat_ref[...]
    b1 = jnp.broadcast_to(b1_ref[...], (B, H))

    h0 = jnp.zeros((B, H), jnp.float32)
    h1 = jnp.zeros((B, H), jnp.float32)

    # --- (3) fully unrolled recurrence (T is static and small): static time
    #     slices, full scheduler visibility to overlap the two layers.
    for t in range(T):
        # layer 0: h0_t = tanh(xproj_t + h0_{t-1} @ W_hh0)
        h0 = jnp.tanh(xproj[:, t, :]
                      + jnp.dot(h0, whh0, preferred_element_type=jnp.float32))
        # layer 1 (fused): h1_t = tanh([h0_t, h1_{t-1}] @ [W_ih1; W_hh1] + b1)
        h01 = jnp.concatenate([h0, h1], axis=-1)              # (B, 2H)
        h1 = jnp.tanh(jnp.dot(h01, w1cat,
                              preferred_element_type=jnp.float32) + b1)

    # --- MLP head: Linear -> SiLU -> Linear
    z = jnp.dot(h1, wm1_ref[...], preferred_element_type=jnp.float32) + bm1_ref[...]
    # SiLU(z) = z * sigmoid(z); reciprocal on the EUP (approx) instead of a VPU divide.
    z = z * pl.reciprocal(1.0 + jnp.exp(-z), approx=True)
    out_ref[...] = (jnp.dot(z, wm2_ref[...], preferred_element_type=jnp.float32)
                    + bm2_ref[...])


def rnn_forward(x, params):
    """x: (B, T, D) float32, batch-first exactly like the PyTorch module."""
    B, T, D = x.shape
    C = params["wm2"].shape[1]

    # (2) fuse layer-1 weights once host-side: (2H, H)
    w1cat = jnp.concatenate([params["wih1"], params["whh1"]], axis=0)

    inputs = (
        x,
        params["wih0"], params["b0"],
        params["whh0"],
        w1cat, params["b1"],
        params["wm1"], params["bm1"],
        params["wm2"], params["bm2"],
    )
    vmem = pl.BlockSpec(memory_space=pltpu.MemorySpace.VMEM)
    return pl.pallas_call(
        rnn_mlp_kernel,
        out_shape=jax.ShapeDtypeStruct((B, C), jnp.float32),
        in_specs=[vmem] * len(inputs),
        out_specs=vmem,
    )(*inputs)


def rnn_forward_ref(x, params):
    """Pure-JAX reference (mirrors the PyTorch forward)."""
    B, T, _ = x.shape
    H = params["whh0"].shape[0]
    h0 = jnp.zeros((B, H), jnp.float32)
    h1 = jnp.zeros((B, H), jnp.float32)
    for t in range(T):
        h0 = jnp.tanh(x[:, t, :] @ params["wih0"] + h0 @ params["whh0"] + params["b0"])
        h1 = jnp.tanh(h0 @ params["wih1"] + h1 @ params["whh1"] + params["b1"])
    z = h1 @ params["wm1"] + params["bm1"]
    z = z * jax.nn.sigmoid(z)
    return z @ params["wm2"] + params["bm2"]


def xavier_uniform(key, shape_out_in):
    """PyTorch xavier_uniform_ on a (out, in) weight, returned transposed (in, out)."""
    fan_out, fan_in = shape_out_in
    bound = (6.0 / (fan_in + fan_out)) ** 0.5
    w = jax.random.uniform(key, shape_out_in, jnp.float32, -bound, bound)
    return w.T  # kernel uses (in, out)


def make_params(key, input_size, hidden_size, mlp_hidden_size, num_classes):
    ks = jax.random.split(key, 6)
    return {
        # RNN layer 0
        "wih0": xavier_uniform(ks[0], (hidden_size, input_size)),
        "whh0": xavier_uniform(ks[1], (hidden_size, hidden_size)),
        "b0": jnp.zeros((1, hidden_size), jnp.float32),   # b_ih + b_hh (zero-init)
        # RNN layer 1
        "wih1": xavier_uniform(ks[2], (hidden_size, hidden_size)),
        "whh1": xavier_uniform(ks[3], (hidden_size, hidden_size)),
        "b1": jnp.zeros((1, hidden_size), jnp.float32),
        # MLP
        "wm1": xavier_uniform(ks[4], (mlp_hidden_size, hidden_size)),
        "bm1": jnp.zeros((1, mlp_hidden_size), jnp.float32),
        "wm2": xavier_uniform(ks[5], (num_classes, mlp_hidden_size)),
        "bm2": jnp.zeros((1, num_classes), jnp.float32),
    }


if __name__ == "__main__":
    # Module config: input_size = 2*12 traces, num_layers = 2, 8 output classes.
    B, T = 2, 8
    input_size, hidden_size = 24, 32
    mlp_hidden_size, num_classes = 64, 8

    key = jax.random.PRNGKey(0)
    kx, kp = jax.random.split(key)
    x = jax.random.normal(kx, (B, T, input_size), jnp.float32)
    params = make_params(kp, input_size, hidden_size, mlp_hidden_size, num_classes)

    out = rnn_forward(x, params)
    jax.block_until_ready(out)
    assert out.shape == (B, num_classes)

    # Correctness check vs. pure-JAX reference (lenient tol: approx reciprocal in SiLU).
    ref = rnn_forward_ref(x, params)
    assert jnp.allclose(out, ref, atol=5e-3, rtol=5e-3), (out, ref)

    print("KERNEL_OK")
</pallas_src>

<mosaic_0001>
module attributes {stable_mosaic.version = 11 : i64} {
  func.func @rnn_mlp_kernel(%arg0: memref<2x8x24xf32, #tpu.memory_space<vmem>>, %arg1: memref<24x32xf32, #tpu.memory_space<vmem>>, %arg2: memref<1x32xf32, #tpu.memory_space<vmem>>, %arg3: memref<32x32xf32, #tpu.memory_space<vmem>>, %arg4: memref<64x32xf32, #tpu.memory_space<vmem>>, %arg5: memref<1x32xf32, #tpu.memory_space<vmem>>, %arg6: memref<32x64xf32, #tpu.memory_space<vmem>>, %arg7: memref<1x64xf32, #tpu.memory_space<vmem>>, %arg8: memref<64x8xf32, #tpu.memory_space<vmem>>, %arg9: memref<1x8xf32, #tpu.memory_space<vmem>>, %arg10: memref<2x8xf32, #tpu.memory_space<vmem>>) attributes {dimension_semantics = [], scalar_prefetch = 0 : i64, scratch_operands = 0 : i64, tpu.core_type = #tpu.core_type<tc>} {
    %c0 = arith.constant 0 : index
    %c0_0 = arith.constant 0 : index
    %c0_1 = arith.constant 0 : index
    %0 = vector.load %arg0[%c0, %c0_0, %c0_1] : memref<2x8x24xf32, #tpu.memory_space<vmem>>, vector<2x8x24xf32>
    %1 = vector.shape_cast %0 : vector<2x8x24xf32> to vector<16x24xf32>
    %c0_2 = arith.constant 0 : index
    %c0_3 = arith.constant 0 : index
    %2 = vector.load %arg1[%c0_2, %c0_3] : memref<24x32xf32, #tpu.memory_space<vmem>>, vector<24x32xf32>
    %cst = arith.constant dense<0.000000e+00> : vector<16x32xf32>
    %3 = tpu.matmul %1, %2, %cst {dimension_numbers = #tpu.dot_dimension_numbers<[1], [0], [0], [1], [0, 0, 1, 1], [], []>} : vector<16x24xf32>, vector<24x32xf32>, vector<16x32xf32> -> vector<16x32xf32>
    %c0_4 = arith.constant 0 : index
    %c0_5 = arith.constant 0 : index
    %4 = vector.load %arg2[%c0_4, %c0_5] : memref<1x32xf32, #tpu.memory_space<vmem>>, vector<1x32xf32>
    %5 = vector.broadcast %4 : vector<1x32xf32> to vector<16x32xf32>
    %6 = arith.addf %3, %5 : vector<16x32xf32>
    %7 = vector.shape_cast %6 : vector<16x32xf32> to vector<2x8x32xf32>
    %c0_6 = arith.constant 0 : index
    %c0_7 = arith.constant 0 : index
    %8 = vector.load %arg3[%c0_6, %c0_7] : memref<32x32xf32, #tpu.memory_space<vmem>>, vector<32x32xf32>
    %c0_8 = arith.constant 0 : index
    %c0_9 = arith.constant 0 : index
    %9 = vector.load %arg4[%c0_8, %c0_9] : memref<64x32xf32, #tpu.memory_space<vmem>>, vector<64x32xf32>
    %c0_10 = arith.constant 0 : index
    %c0_11 = arith.constant 0 : index
    %10 = vector.load %arg5[%c0_10, %c0_11] : memref<1x32xf32, #tpu.memory_space<vmem>>, vector<1x32xf32>
    %11 = vector.shape_cast %10 : vector<1x32xf32> to vector<1x32xf32>
    %12 = vector.broadcast %11 : vector<1x32xf32> to vector<2x32xf32>
    %cst_12 = arith.constant 0.000000e+00 : f32
    %13 = vector.broadcast %cst_12 : f32 to vector<2x32xf32>
    %cst_13 = arith.constant 0.000000e+00 : f32
    %14 = vector.broadcast %cst_13 : f32 to vector<2x32xf32>
    %15 = vector.extract_strided_slice %7 {offsets = [0, 0, 0], sizes = [2, 1, 32], strides = [1, 1, 1]} : vector<2x8x32xf32> to vector<2x1x32xf32>
    %16 = vector.shape_cast %15 : vector<2x1x32xf32> to vector<2x32xf32>
    %cst_14 = arith.constant dense<0.000000e+00> : vector<2x32xf32>
    %17 = tpu.matmul %13, %8, %cst_14 {dimension_numbers = #tpu.dot_dimension_numbers<[1], [0], [0], [1], [0, 0, 1, 1], [], []>} : vector<2x32xf32>, vector<32x32xf32>, vector<2x32xf32> -> vector<2x32xf32>
    %18 = arith.addf %16, %17 : vector<2x32xf32>
    %19 = math.tanh %18 : vector<2x32xf32>
    %20 = tpu.concatenate %19, %14 in 1 : vector<2x32xf32>, vector<2x32xf32> -> vector<2x64xf32>
    %cst_15 = arith.constant dense<0.000000e+00> : vector<2x32xf32>
    %21 = tpu.matmul %20, %9, %cst_15 {dimension_numbers = #tpu.dot_dimension_numbers<[1], [0], [0], [1], [0, 0, 1, 1], [], []>} : vector<2x64xf32>, vector<64x32xf32>, vector<2x32xf32> -> vector<2x32xf32>
    %22 = arith.addf %21, %12 : vector<2x32xf32>
    %23 = math.tanh %22 : vector<2x32xf32>
    %24 = vector.extract_strided_slice %7 {offsets = [0, 1, 0], sizes = [2, 1, 32], strides = [1, 1, 1]} : vector<2x8x32xf32> to vector<2x1x32xf32>
    %25 = vector.shape_cast %24 : vector<2x1x32xf32> to vector<2x32xf32>
    %cst_16 = arith.constant dense<0.000000e+00> : vector<2x32xf32>
    %26 = tpu.matmul %19, %8, %cst_16 {dimension_numbers = #tpu.dot_dimension_numbers<[1], [0], [0], [1], [0, 0, 1, 1], [], []>} : vector<2x32xf32>, vector<32x32xf32>, vector<2x32xf32> -> vector<2x32xf32>
    %27 = arith.addf %25, %26 : vector<2x32xf32>
    %28 = math.tanh %27 : vector<2x32xf32>
    %29 = tpu.concatenate %28, %23 in 1 : vector<2x32xf32>, vector<2x32xf32> -> vector<2x64xf32>
    %cst_17 = arith.constant dense<0.000000e+00> : vector<2x32xf32>
    %30 = tpu.matmul %29, %9, %cst_17 {dimension_numbers = #tpu.dot_dimension_numbers<[1], [0], [0], [1], [0, 0, 1, 1], [], []>} : vector<2x64xf32>, vector<64x32xf32>, vector<2x32xf32> -> vector<2x32xf32>
    %31 = arith.addf %30, %12 : vector<2x32xf32>
    %32 = math.tanh %31 : vector<2x32xf32>
    %33 = vector.extract_strided_slice %7 {offsets = [0, 2, 0], sizes = [2, 1, 32], strides = [1, 1, 1]} : vector<2x8x32xf32> to vector<2x1x32xf32>
    %34 = vector.shape_cast %33 : vector<2x1x32xf32> to vector<2x32xf32>
    %cst_18 = arith.constant dense<0.000000e+00> : vector<2x32xf32>
    %35 = tpu.matmul %28, %8, %cst_18 {dimension_numbers = #tpu.dot_dimension_numbers<[1], [0], [0], [1], [0, 0, 1, 1], [], []>} : vector<2x32xf32>, vector<32x32xf32>, vector<2x32xf32> -> vector<2x32xf32>
    %36 = arith.addf %34, %35 : vector<2x32xf32>
    %37 = math.tanh %36 : vector<2x32xf32>
    %38 = tpu.concatenate %37, %32 in 1 : vector<2x32xf32>, vector<2x32xf32> -> vector<2x64xf32>
    %cst_19 = arith.constant dense<0.000000e+00> : vector<2x32xf32>
    %39 = tpu.matmul %38, %9, %cst_19 {dimension_numbers = #tpu.dot_dimension_numbers<[1], [0], [0], [1], [0, 0, 1, 1], [], []>} : vector<2x64xf32>, vector<64x32xf32>, vector<2x32xf32> -> vector<2x32xf32>
    %40 = arith.addf %39, %12 : vector<2x32xf32>
    %41 = math.tanh %40 : vector<2x32xf32>
    %42 = vector.extract_strided_slice %7 {offsets = [0, 3, 0], sizes = [2, 1, 32], strides = [1, 1, 1]} : vector<2x8x32xf32> to vector<2x1x32xf32>
    %43 = vector.shape_cast %42 : vector<2x1x32xf32> to vector<2x32xf32>
    %cst_20 = arith.constant dense<0.000000e+00> : vector<2x32xf32>
    %44 = tpu.matmul %37, %8, %cst_20 {dimension_numbers = #tpu.dot_dimension_numbers<[1], [0], [0], [1], [0, 0, 1, 1], [], []>} : vector<2x32xf32>, vector<32x32xf32>, vector<2x32xf32> -> vector<2x32xf32>
    %45 = arith.addf %43, %44 : vector<2x32xf32>
    %46 = math.tanh %45 : vector<2x32xf32>
    %47 = tpu.concatenate %46, %41 in 1 : vector<2x32xf32>, vector<2x32xf32> -> vector<2x64xf32>
    %cst_21 = arith.constant dense<0.000000e+00> : vector<2x32xf32>
    %48 = tpu.matmul %47, %9, %cst_21 {dimension_numbers = #tpu.dot_dimension_numbers<[1], [0], [0], [1], [0, 0, 1, 1], [], []>} : vector<2x64xf32>, vector<64x32xf32>, vector<2x32xf32> -> vector<2x32xf32>
    %49 = arith.addf %48, %12 : vector<2x32xf32>
    %50 = math.tanh %49 : vector<2x32xf32>
    %51 = vector.extract_strided_slice %7 {offsets = [0, 4, 0], sizes = [2, 1, 32], strides = [1, 1, 1]} : vector<2x8x32xf32> to vector<2x1x32xf32>
    %52 = vector.shape_cast %51 : vector<2x1x32xf32> to vector<2x32xf32>
    %cst_22 = arith.constant dense<0.000000e+00> : vector<2x32xf32>
    %53 = tpu.matmul %46, %8, %cst_22 {dimension_numbers = #tpu.dot_dimension_numbers<[1], [0], [0], [1], [0, 0, 1, 1], [], []>} : vector<2x32xf32>, vector<32x32xf32>, vector<2x32xf32> -> vector<2x32xf32>
    %54 = arith.addf %52, %53 : vector<2x32xf32>
    %55 = math.tanh %54 : vector<2x32xf32>
    %56 = tpu.concatenate %55, %50 in 1 : vector<2x32xf32>, vector<2x32xf32> -> vector<2x64xf32>
    %cst_23 = arith.constant dense<0.000000e+00> : vector<2x32xf32>
    %57 = tpu.matmul %56, %9, %cst_23 {dimension_numbers = #tpu.dot_dimension_numbers<[1], [0], [0], [1], [0, 0, 1, 1], [], []>} : vector<2x64xf32>, vector<64x32xf32>, vector<2x32xf32> -> vector<2x32xf32>
    %58 = arith.addf %57, %12 : vector<2x32xf32>
    %59 = math.tanh %58 : vector<2x32xf32>
    %60 = vector.extract_strided_slice %7 {offsets = [0, 5, 0], sizes = [2, 1, 32], strides = [1, 1, 1]} : vector<2x8x32xf32> to vector<2x1x32xf32>
    %61 = vector.shape_cast %60 : vector<2x1x32xf32> to vector<2x32xf32>
    %cst_24 = arith.constant dense<0.000000e+00> : vector<2x32xf32>
    %62 = tpu.matmul %55, %8, %cst_24 {dimension_numbers = #tpu.dot_dimension_numbers<[1], [0], [0], [1], [0, 0, 1, 1], [], []>} : vector<2x32xf32>, vector<32x32xf32>, vector<2x32xf32> -> vector<2x32xf32>
    %63 = arith.addf %61, %62 : vector<2x32xf32>
    %64 = math.tanh %63 : vector<2x32xf32>
    %65 = tpu.concatenate %64, %59 in 1 : vector<2x32xf32>, vector<2x32xf32> -> vector<2x64xf32>
    %cst_25 = arith.constant dense<0.000000e+00> : vector<2x32xf32>
    %66 = tpu.matmul %65, %9, %cst_25 {dimension_numbers = #tpu.dot_dimension_numbers<[1], [0], [0], [1], [0, 0, 1, 1], [], []>} : vector<2x64xf32>, vector<64x32xf32>, vector<2x32xf32> -> vector<2x32xf32>
    %67 = arith.addf %66, %12 : vector<2x32xf32>
    %68 = math.tanh %67 : vector<2x32xf32>
    %69 = vector.extract_strided_slice %7 {offsets = [0, 6, 0], sizes = [2, 1, 32], strides = [1, 1, 1]} : vector<2x8x32xf32> to vector<2x1x32xf32>
    %70 = vector.shape_cast %69 : vector<2x1x32xf32> to vector<2x32xf32>
    %cst_26 = arith.constant dense<0.000000e+00> : vector<2x32xf32>
    %71 = tpu.matmul %64, %8, %cst_26 {dimension_numbers = #tpu.dot_dimension_numbers<[1], [0], [0], [1], [0, 0, 1, 1], [], []>} : vector<2x32xf32>, vector<32x32xf32>, vector<2x32xf32> -> vector<2x32xf32>
    %72 = arith.addf %70, %71 : vector<2x32xf32>
    %73 = math.tanh %72 : vector<2x32xf32>
    %74 = tpu.concatenate %73, %68 in 1 : vector<2x32xf32>, vector<2x32xf32> -> vector<2x64xf32>
    %cst_27 = arith.constant dense<0.000000e+00> : vector<2x32xf32>
    %75 = tpu.matmul %74, %9, %cst_27 {dimension_numbers = #tpu.dot_dimension_numbers<[1], [0], [0], [1], [0, 0, 1, 1], [], []>} : vector<2x64xf32>, vector<64x32xf32>, vector<2x32xf32> -> vector<2x32xf32>
    %76 = arith.addf %75, %12 : vector<2x32xf32>
    %77 = math.tanh %76 : vector<2x32xf32>
    %78 = vector.extract_strided_slice %7 {offsets = [0, 7, 0], sizes = [2, 1, 32], strides = [1, 1, 1]} : vector<2x8x32xf32> to vector<2x1x32xf32>
    %79 = vector.shape_cast %78 : vector<2x1x32xf32> to vector<2x32xf32>
    %cst_28 = arith.constant dense<0.000000e+00> : vector<2x32xf32>
    %80 = tpu.matmul %73, %8, %cst_28 {dimension_numbers = #tpu.dot_dimension_numbers<[1], [0], [0], [1], [0, 0, 1, 1], [], []>} : vector<2x32xf32>, vector<32x32xf32>, vector<2x32xf32> -> vector<2x32xf32>
    %81 = arith.addf %79, %80 : vector<2x32xf32>
    %82 = math.tanh %81 : vector<2x32xf32>
    %83 = tpu.concatenate %82, %77 in 1 : vector<2x32xf32>, vector<2x32xf32> -> vector<2x64xf32>
    %cst_29 = arith.constant dense<0.000000e+00> : vector<2x32xf32>
    %84 = tpu.matmul %83, %9, %cst_29 {dimension_numbers = #tpu.dot_dimension_numbers<[1], [0], [0], [1], [0, 0, 1, 1], [], []>} : vector<2x64xf32>, vector<64x32xf32>, vector<2x32xf32> -> vector<2x32xf32>
    %85 = arith.addf %84, %12 : vector<2x32xf32>
    %86 = math.tanh %85 : vector<2x32xf32>
    %c0_30 = arith.constant 0 : index
    %c0_31 = arith.constant 0 : index
    %87 = vector.load %arg6[%c0_30, %c0_31] : memref<32x64xf32, #tpu.memory_space<vmem>>, vector<32x64xf32>
    %cst_32 = arith.constant dense<0.000000e+00> : vector<2x64xf32>
    %88 = tpu.matmul %86, %87, %cst_32 {dimension_numbers = #tpu.dot_dimension_numbers<[1], [0], [0], [1], [0, 0, 1, 1], [], []>} : vector<2x32xf32>, vector<32x64xf32>, vector<2x64xf32> -> vector<2x64xf32>
    %c0_33 = arith.constant 0 : index
    %c0_34 = arith.constant 0 : index
    %89 = vector.load %arg7[%c0_33, %c0_34] : memref<1x64xf32, #tpu.memory_space<vmem>>, vector<1x64xf32>
    %90 = vector.broadcast %89 : vector<1x64xf32> to vector<2x64xf32>
    %91 = arith.addf %88, %90 : vector<2x64xf32>
    %cst_35 = arith.constant 0.000000e+00 : f32
    %92 = vector.broadcast %cst_35 : f32 to vector<2x64xf32>
    %93 = arith.subf %92, %91 : vector<2x64xf32>
    %94 = math.exp %93 : vector<2x64xf32>
    %cst_36 = arith.constant 1.000000e+00 : f32
    %95 = vector.broadcast %cst_36 : f32 to vector<2x64xf32>
    %96 = arith.addf %95, %94 : vector<2x64xf32>
    %97 = tpu.reciprocal %96 {approx = true} : vector<2x64xf32> -> vector<2x64xf32>
    %98 = arith.mulf %91, %97 : vector<2x64xf32>
    %c0_37 = arith.constant 0 : index
    %c0_38 = arith.constant 0 : index
    %99 = vector.load %arg8[%c0_37, %c0_38] : memref<64x8xf32, #tpu.memory_space<vmem>>, vector<64x8xf32>
    %cst_39 = arith.constant dense<0.000000e+00> : vector<2x8xf32>
    %100 = tpu.matmul %98, %99, %cst_39 {dimension_numbers = #tpu.dot_dimension_numbers<[1], [0], [0], [1], [0, 0, 1, 1], [], []>} : vector<2x64xf32>, vector<64x8xf32>, vector<2x8xf32> -> vector<2x8xf32>
    %c0_40 = arith.constant 0 : index
    %c0_41 = arith.constant 0 : index
    %101 = vector.load %arg9[%c0_40, %c0_41] : memref<1x8xf32, #tpu.memory_space<vmem>>, vector<1x8xf32>
    %102 = vector.broadcast %101 : vector<1x8xf32> to vector<2x8xf32>
    %103 = arith.addf %100, %102 : vector<2x8xf32>
    %c0_42 = arith.constant 0 : index
    %c0_43 = arith.constant 0 : index
    %104 = vector.load %arg10[%c0_42, %c0_43] : memref<2x8xf32, #tpu.memory_space<vmem>>, vector<2x8xf32>
    tpu.vector_store %arg10[%c0_42, %c0_43], %103 {strides = array<i32>} : memref<2x8xf32, #tpu.memory_space<vmem>>, vector<2x8xf32>,
    return
  }
}

</mosaic_0001>

<llo_original>
// kernel: tpu_custom_call.1
$region0: #{tpu_custom_call.1}
  #allocation0 [shape = 'u32[]', space=smem, size = 0x4, offset = 0x4, fixed_abs, tag = 'smem constant byte address 0x4 - core index']
  #allocation1 [shape = 'u32[72,128]{1,0:T(1,128)}', space=vmem, size = 0x9000, scoped, tag = 'internal scratch']
  %s0 = inlined_call_operand.vmem [shape: f32[2,8,24], index: 0, kind: input, shape index: {}]
  %s1 = inlined_call_operand.vmem [shape: f32[24,32], index: 1, kind: input, shape index: {}]
  %s2 = inlined_call_operand.vmem [shape: f32[1,32], index: 2, kind: input, shape index: {}]
  %s3 = inlined_call_operand.vmem [shape: f32[32,32], index: 3, kind: input, shape index: {}]
  %s4 = inlined_call_operand.vmem [shape: f32[64,32], index: 4, kind: input, shape index: {}]
  %s5 = inlined_call_operand.vmem [shape: f32[1,32], index: 5, kind: input, shape index: {}]
  %s6 = inlined_call_operand.vmem [shape: f32[32,64], index: 6, kind: input, shape index: {}]
  %s7 = inlined_call_operand.vmem [shape: f32[1,64], index: 7, kind: input, shape index: {}]
  %s8 = inlined_call_operand.vmem [shape: f32[64,8], index: 8, kind: input, shape index: {}]
  %s9 = inlined_call_operand.vmem [shape: f32[1,8], index: 9, kind: input, shape index: {}]
  %s10 = inlined_call_operand.hbm [shape: f32[2,8], index: 10, kind: output, shape index: {}]
  %s11 = sld [smem:[#allocation0]]
  $region50: #{tpu_custom_call.1} parent=0
    _
  %s13 = ssub.s32 1, %s11
  %s14 = scalar_select 0, %s13, %s11
  $region1: #{tpu_custom_call.1} parent=0
    #allocation2 [shape = 'u8[1024]{0}', space=vmem, size = 0x400, scoped, tag = 'output window, operand 0, single buffered']
    #allocation3 [shape = 's32[1]{0}', space=sflag, size = 0x4, scoped, tag = 'scoped memory for tpu_custom_call.1']
    %15 = vsyncpa [#allocation3], 0
    // Predicated region
    $region2: #{tpu_custom_call.1} parent=1 // pred_check
      _
    $region3: #{tpu_custom_call.1} parent=1 // pred_check_branch
      %17 = sbr.rel (0) target = $region5
    $region4: #{tpu_custom_call.1} parent=1 // pred_region
      _
    $region5: #{tpu_custom_call.1} parent=1 // pred_fallthru
      _
    // Predicated region
    $region6: #{tpu_custom_call.1} parent=1 // pred_check
      _
    $region7: #{tpu_custom_call.1} parent=1 // pred_check_branch
      %19 = sbr.rel (0) target = $region9
    $region8: #{tpu_custom_call.1} parent=1 // pred_region
      _
    $region9: #{tpu_custom_call.1} parent=1 // pred_fallthru
      _
    // Predicated region
    $region10: #{tpu_custom_call.1} parent=1 // pred_check
      _
    $region11: #{tpu_custom_call.1} parent=1 // pred_check_branch
      %21 = sbr.rel (0) target = $region13
    $region12: #{tpu_custom_call.1} parent=1 // pred_region
      _
    $region13: #{tpu_custom_call.1} parent=1 // pred_fallthru
      _
    // Predicated region
    $region14: #{tpu_custom_call.1} parent=1 // pred_check
      _
    $region15: #{tpu_custom_call.1} parent=1 // pred_check_branch
      %23 = sbr.rel (0) target = $region17
    $region16: #{tpu_custom_call.1} parent=1 // pred_region
      _
    $region17: #{tpu_custom_call.1} parent=1 // pred_fallthru
      _
    // Predicated region
    $region18: #{tpu_custom_call.1} parent=1 // pred_check
      _
    $region19: #{tpu_custom_call.1} parent=1 // pred_check_branch
      %25 = sbr.rel (0) target = $region21
    $region20: #{tpu_custom_call.1} parent=1 // pred_region
      _
    $region21: #{tpu_custom_call.1} parent=1 // pred_fallthru
      _
    // Predicated region
    $region22: #{tpu_custom_call.1} parent=1 // pred_check
      _
    $region23: #{tpu_custom_call.1} parent=1 // pred_check_branch
      %27 = sbr.rel (0) target = $region25
    $region24: #{tpu_custom_call.1} parent=1 // pred_region
      _
    $region25: #{tpu_custom_call.1} parent=1 // pred_fallthru
      _
    // Predicated region
    $region26: #{tpu_custom_call.1} parent=1 // pred_check
      _
    $region27: #{tpu_custom_call.1} parent=1 // pred_check_branch
      %29 = sbr.rel (0) target = $region29
    $region28: #{tpu_custom_call.1} parent=1 // pred_region
      _
    $region29: #{tpu_custom_call.1} parent=1 // pred_fallthru
      _
    // Predicated region
    $region30: #{tpu_custom_call.1} parent=1 // pred_check
      _
    $region31: #{tpu_custom_call.1} parent=1 // pred_check_branch
      %31 = sbr.rel (0) target = $region33
    $region32: #{tpu_custom_call.1} parent=1 // pred_region
      _
    $region33: #{tpu_custom_call.1} parent=1 // pred_fallthru
      _
    // Predicated region
    $region34: #{tpu_custom_call.1} parent=1 // pred_check
      _
    $region35: #{tpu_custom_call.1} parent=1 // pred_check_branch
      %33 = sbr.rel (0) target = $region37
    $region36: #{tpu_custom_call.1} parent=1 // pred_region
      _
    $region37: #{tpu_custom_call.1} parent=1 // pred_fallthru
      _
    // Predicated region
    $region38: #{tpu_custom_call.1} parent=1 // pred_check
      _
    $region39: #{tpu_custom_call.1} parent=1 // pred_check_branch
      %35 = sbr.rel (0) target = $region41
    $region40: #{tpu_custom_call.1} parent=1 // pred_region
      _
    $region41: #{tpu_custom_call.1} parent=1 // pred_fallthru
      _
    %v36 = vld [vmem:[%s0] sm:$0xff]
    %v37 = vld [vmem:[%s0 + $0x8] sm:$0xff]
    %v38 = vld [vmem:[%s1] sm:$0xff]
    %v39 = vld [vmem:[%s1 + $0x8] sm:$0xff]
    %v40 = vld [vmem:[%s1 + $0x10] sm:$0xff]
    %v41 = vld [vmem:[%s2] sm:$0x1]
    %v43 = vperm.slane %v41, 0
    %vm45 = vcmask 195584
    %v47 = vsel %vm45, %v36, 0
    %v50 = vsel %vm45, %v37, 0
    %52 = vmatpush.msra.mxu0 0.0
    %53 = vmatpush.msra.mxu0 0.0
    %54 = vmatpush.msra.mxu0 0.0
    %55 = vmatpush.msra.mxu0 0.0
    %56 = vmatpush.msra.mxu0 0.0
    %57 = vmatpush.msra.mxu0 0.0
    %58 = vmatpush.msra.mxu0 0.0
    %59 = vmatpush.msra.mxu0 0.0
    %60 = vmatpush.msra.mxu0 0.0
    %61 = vmatpush.msra.mxu0 0.0
    %62 = vmatpush.msra.mxu0 0.0
    %63 = vmatpush.msra.mxu0 0.0
    %64 = vmatpush.msra.mxu0 0.0
    %65 = vmatpush.msra.mxu0 %v40
    %66 = vmatpush.msra.mxu0 %v39
    %67 = vmatpush.msra.mxu0 %v38
    %68 = vmatmul.f32.gmra.mxu0 %v47
    %v69 = vpop.f32.mrf.mxu0
    %v70 = vadd.f32 %v43, %v69
    %71 = vmatmul.f32.gmra.mxu0 %v50
    %v72 = vpop.f32.mrf.mxu0
    %v73 = vadd.f32 %v43, %v72
    %74 = vdwg.mxu0
    %v75 = vld [vmem:[%s3] sm:$0xff]
    %v76 = vld [vmem:[%s3 + $0x8] sm:$0xff]
    %v77 = vld [vmem:[%s3 + $0x10] sm:$0xff]
    %v78 = vld [vmem:[%s3 + $0x18] sm:$0xff]
    %v79 = vld [vmem:[%s4] sm:$0xff]
    %v80 = vld [vmem:[%s4 + $0x8] sm:$0xff]
    %v81 = vld [vmem:[%s4 + $0x10] sm:$0xff]
    %v82 = vld [vmem:[%s4 + $0x18] sm:$0xff]
    %v83 = vld [vmem:[%s4 + $0x20] sm:$0xff]
    %v84 = vld [vmem:[%s4 + $0x28] sm:$0xff]
    %v85 = vld [vmem:[%s4 + $0x30] sm:$0xff]
    %v86 = vld [vmem:[%s4 + $0x38] sm:$0xff]
    %v87 = vld [vmem:[%s5] sm:$0x1]
    %v89 = vperm.slane %v87, 0
    %vm91 = vcmask 261120
    %v93 = vsel %vm91, 0.0, 0
    %95 = vmatpush.msra.mxu0 0.0
    %96 = vmatpush.msra.mxu0 0.0
    %97 = vmatpush.msra.mxu0 0.0
    %98 = vmatpush.msra.mxu0 0.0
    %99 = vmatpush.msra.mxu0 0.0
    %100 = vmatpush.msra.mxu0 0.0
    %101 = vmatpush.msra.mxu0 0.0
    %102 = vmatpush.msra.mxu0 0.0
    %103 = vmatpush.msra.mxu0 0.0
    %104 = vmatpush.msra.mxu0 0.0
    %105 = vmatpush.msra.mxu0 0.0
    %106 = vmatpush.msra.mxu0 0.0
    %107 = vmatpush.msra.mxu0 %v78
    %108 = vmatpush.msra.mxu0 %v77
    %109 = vmatpush.msra.mxu0 %v76
    %110 = vmatpush.msra.mxu0 %v75
    %111 = vmatmul.f32.gmra.mxu0 %v93
    %v112 = vpop.f32.mrf.mxu0
    %v113 = vadd.f32 0.0, %v112
    %114 = vdwg.mxu0
    %v116 = vrot.slane %v113, 1
    %v119 = vadd.f32 %v70, %v113
    %v120 = vadd.f32 %v73, %v116
    %v121 = vtanh.pop %v119
    %v122 = vtanh.pop %v120
    %v125 = vrot.slane %v122, 7
    %vm126 = vcmask 1041409
    %v127 = vsel %vm126, %v125, %v121
    %v129 = vsel %vm91, %v127, 0.0
    %vm130 = vcmask 523264
    %v132 = vsel %vm130, %v129, 0
    %134 = vmatpush.msra.mxu0 0.0
    %135 = vmatpush.msra.mxu0 0.0
    %136 = vmatpush.msra.mxu0 0.0
    %137 = vmatpush.msra.mxu0 0.0
    %138 = vmatpush.msra.mxu0 0.0
    %139 = vmatpush.msra.mxu0 0.0
    %140 = vmatpush.msra.mxu0 0.0
    %141 = vmatpush.msra.mxu0 0.0
    %142 = vmatpush.msra.mxu0 %v86
    %143 = vmatpush.msra.mxu0 %v85
    %144 = vmatpush.msra.mxu0 %v84
    %145 = vmatpush.msra.mxu0 %v83
    %146 = vmatpush.msra.mxu0 %v82
    %147 = vmatpush.msra.mxu0 %v81
    %148 = vmatpush.msra.mxu0 %v80
    %149 = vmatpush.msra.mxu0 %v79
    %150 = vmatmul.f32.gmra.mxu0 %v132
    %v151 = vpop.f32.mrf.mxu0
    %v152 = vadd.f32 %v89, %v151
    %153 = vdwg.mxu0
    %v154 = vtanh.pop %v152
    %v155 = vsel %vm91, %v127, 0
    %157 = vmatpush.msra.mxu0 0.0
    %158 = vmatpush.msra.mxu0 0.0
    %159 = vmatpush.msra.mxu0 0.0
    %160 = vmatpush.msra.mxu0 0.0
    %161 = vmatpush.msra.mxu0 0.0
    %162 = vmatpush.msra.mxu0 0.0
    %163 = vmatpush.msra.mxu0 0.0
    %164 = vmatpush.msra.mxu0 0.0
    %165 = vmatpush.msra.mxu0 0.0
    %166 = vmatpush.msra.mxu0 0.0
    %167 = vmatpush.msra.mxu0 0.0
    %168 = vmatpush.msra.mxu0 0.0
    %169 = vmatpush.msra.mxu0 %v78
    %170 = vmatpush.msra.mxu0 %v77
    %171 = vmatpush.msra.mxu0 %v76
    %172 = vmatpush.msra.mxu0 %v75
    %173 = vmatmul.f32.gmra.mxu0 %v155
    %v174 = vpop.f32.mrf.mxu0
    %v175 = vadd.f32 0.0, %v174
    %176 = vdwg.mxu0
    %v178 = vrot.slane %v175, 7
    %v181 = vadd.f32 %v70, %v178
    %v182 = vadd.f32 %v73, %v175
    %v183 = vtanh.pop %v181
    %v184 = vtanh.pop %v182
    %v187 = vrot.slane %v184, 7
    %vm188 = vcmask 1042434
    %v189 = vsel %vm188, %v187, %v183
    %v192 = vrot.slane %v154, 7
    %193 = vrot.lane.b32.xlu0 %v192, 32
    %v194 = vpop.permute.xlu0 %193
    %v196 = vsel %vm91, %v189, %v194
    %v198 = vrot.slane %v196, 1
    %v199 = vsel %vm130, %v198, 0
    %201 = vmatpush.msra.mxu0 0.0
    %202 = vmatpush.msra.mxu0 0.0
    %203 = vmatpush.msra.mxu0 0.0
    %204 = vmatpush.msra.mxu0 0.0
    %205 = vmatpush.msra.mxu0 0.0
    %206 = vmatpush.msra.mxu0 0.0
    %207 = vmatpush.msra.mxu0 0.0
    %208 = vmatpush.msra.mxu0 0.0
    %209 = vmatpush.msra.mxu0 %v86
    %210 = vmatpush.msra.mxu0 %v85
    %211 = vmatpush.msra.mxu0 %v84
    %212 = vmatpush.msra.mxu0 %v83
    %213 = vmatpush.msra.mxu0 %v82
    %214 = vmatpush.msra.mxu0 %v81
    %215 = vmatpush.msra.mxu0 %v80
    %216 = vmatpush.msra.mxu0 %v79
    %217 = vmatmul.f32.gmra.mxu0 %v199
    %v218 = vpop.f32.mrf.mxu0
    %v219 = vadd.f32 %v89, %v218
    %220 = vdwg.mxu0
    %v221 = vtanh.pop %v219
    %v222 = vrot.slane %v183, 1
    %v223 = vsel %vm126, %v184, %v222
    %v224 = vsel %vm91, %v223, 0
    %226 = vmatpush.msra.mxu0 0.0
    %227 = vmatpush.msra.mxu0 0.0
    %228 = vmatpush.msra.mxu0 0.0
    %229 = vmatpush.msra.mxu0 0.0
    %230 = vmatpush.msra.mxu0 0.0
    %231 = vmatpush.msra.mxu0 0.0
    %232 = vmatpush.msra.mxu0 0.0
    %233 = vmatpush.msra.mxu0 0.0
    %234 = vmatpush.msra.mxu0 0.0
    %235 = vmatpush.msra.mxu0 0.0
    %236 = vmatpush.msra.mxu0 0.0
    %237 = vmatpush.msra.mxu0 0.0
    %238 = vmatpush.msra.mxu0 %v78
    %239 = vmatpush.msra.mxu0 %v77
    %240 = vmatpush.msra.mxu0 %v76
    %241 = vmatpush.msra.mxu0 %v75
    %242 = vmatmul.f32.gmra.mxu0 %v224
    %v243 = vpop.f32.mrf.mxu0
    %v244 = vadd.f32 0.0, %v243
    %245 = vdwg.mxu0
    %v247 = vrot.slane %v244, 6
    %v248 = vrot.slane %v244, 7
    %v251 = vadd.f32 %v70, %v247
    %v252 = vadd.f32 %v73, %v248
    %v253 = vtanh.pop %v251
    %v254 = vtanh.pop %v252
    %v257 = vrot.slane %v254, 7
    %vm258 = vcmask 1043459
    %v259 = vsel %vm258, %v257, %v253
    %v262 = vrot.slane %v221, 6
    %263 = vrot.lane.b32.xlu0 %v262, 32
    %v264 = vpop.permute.xlu0 %263
    %v266 = vsel %vm91, %v259, %v264
    %v268 = vrot.slane %v266, 2
    %v269 = vsel %vm130, %v268, 0
    %271 = vmatpush.msra.mxu0 0.0
    %272 = vmatpush.msra.mxu0 0.0
    %273 = vmatpush.msra.mxu0 0.0
    %274 = vmatpush.msra.mxu0 0.0
    %275 = vmatpush.msra.mxu0 0.0
    %276 = vmatpush.msra.mxu0 0.0
    %277 = vmatpush.msra.mxu0 0.0
    %278 = vmatpush.msra.mxu0 0.0
    %279 = vmatpush.msra.mxu0 %v86
    %280 = vmatpush.msra.mxu0 %v85
    %281 = vmatpush.msra.mxu0 %v84
    %282 = vmatpush.msra.mxu0 %v83
    %283 = vmatpush.msra.mxu0 %v82
    %284 = vmatpush.msra.mxu0 %v81
    %285 = vmatpush.msra.mxu0 %v80
    %286 = vmatpush.msra.mxu0 %v79
    %287 = vmatmul.f32.gmra.mxu0 %v269
    %v288 = vpop.f32.mrf.mxu0
    %v289 = vadd.f32 %v89, %v288
    %290 = vdwg.mxu0
    %v291 = vtanh.pop %v289
    %v292 = vrot.slane %v253, 2
    %v293 = vrot.slane %v254, 1
    %v294 = vsel %vm126, %v293, %v292
    %v295 = vsel %vm91, %v294, 0
    %297 = vmatpush.msra.mxu0 0.0
    %298 = vmatpush.msra.mxu0 0.0
    %299 = vmatpush.msra.mxu0 0.0
    %300 = vmatpush.msra.mxu0 0.0
    %301 = vmatpush.msra.mxu0 0.0
    %302 = vmatpush.msra.mxu0 0.0
    %303 = vmatpush.msra.mxu0 0.0
    %304 = vmatpush.msra.mxu0 0.0
    %305 = vmatpush.msra.mxu0 0.0
    %306 = vmatpush.msra.mxu0 0.0
    %307 = vmatpush.msra.mxu0 0.0
    %308 = vmatpush.msra.mxu0 0.0
    %309 = vmatpush.msra.mxu0 %v78
    %310 = vmatpush.msra.mxu0 %v77
    %311 = vmatpush.msra.mxu0 %v76
    %312 = vmatpush.msra.mxu0 %v75
    %313 = vmatmul.f32.gmra.mxu0 %v295
    %v314 = vpop.f32.mrf.mxu0
    %v315 = vadd.f32 0.0, %v314
    %316 = vdwg.mxu0
    %v318 = vrot.slane %v315, 5
    %v319 = vrot.slane %v315, 6
    %v322 = vadd.f32 %v70, %v318
    %v323 = vadd.f32 %v73, %v319
    %v324 = vtanh.pop %v322
    %v325 = vtanh.pop %v323
    %v328 = vrot.slane %v325, 7
    %vm329 = vcmask 1044484
    %v330 = vsel %vm329, %v328, %v324
    %v333 = vrot.slane %v291, 5
    %334 = vrot.lane.b32.xlu0 %v333, 32
    %v335 = vpop.permute.xlu0 %334
    %v337 = vsel %vm91, %v330, %v335
    %v339 = vrot.slane %v337, 3
    %v340 = vsel %vm130, %v339, 0
    %342 = vmatpush.msra.mxu0 0.0
    %343 = vmatpush.msra.mxu0 0.0
    %344 = vmatpush.msra.mxu0 0.0
    %345 = vmatpush.msra.mxu0 0.0
    %346 = vmatpush.msra.mxu0 0.0
    %347 = vmatpush.msra.mxu0 0.0
    %348 = vmatpush.msra.mxu0 0.0
    %349 = vmatpush.msra.mxu0 0.0
    %350 = vmatpush.msra.mxu0 %v86
    %351 = vmatpush.msra.mxu0 %v85
    %352 = vmatpush.msra.mxu0 %v84
    %353 = vmatpush.msra.mxu0 %v83
    %354 = vmatpush.msra.mxu0 %v82
    %355 = vmatpush.msra.mxu0 %v81
    %356 = vmatpush.msra.mxu0 %v80
    %357 = vmatpush.msra.mxu0 %v79
    %358 = vmatmul.f32.gmra.mxu0 %v340
    %v359 = vpop.f32.mrf.mxu0
    %v360 = vadd.f32 %v89, %v359
    %361 = vdwg.mxu0
    %v362 = vtanh.pop %v360
    %v363 = vrot.slane %v324, 3
    %v364 = vrot.slane %v325, 2
    %v365 = vsel %vm126, %v364, %v363
    %v366 = vsel %vm91, %v365, 0
    %368 = vmatpush.msra.mxu0 0.0
    %369 = vmatpush.msra.mxu0 0.0
    %370 = vmatpush.msra.mxu0 0.0
    %371 = vmatpush.msra.mxu0 0.0
    %372 = vmatpush.msra.mxu0 0.0
    %373 = vmatpush.msra.mxu0 0.0
    %374 = vmatpush.msra.mxu0 0.0
    %375 = vmatpush.msra.mxu0 0.0
    %376 = vmatpush.msra.mxu0 0.0
    %377 = vmatpush.msra.mxu0 0.0
    %378 = vmatpush.msra.mxu0 0.0
    %379 = vmatpush.msra.mxu0 0.0
    %380 = vmatpush.msra.mxu0 %v78
    %381 = vmatpush.msra.mxu0 %v77
    %382 = vmatpush.msra.mxu0 %v76
    %383 = vmatpush.msra.mxu0 %v75
    %384 = vmatmul.f32.gmra.mxu0 %v366
    %v385 = vpop.f32.mrf.mxu0
    %v386 = vadd.f32 0.0, %v385
    %387 = vdwg.mxu0
    %v389 = vrot.slane %v386, 4
    %v390 = vrot.slane %v386, 5
    %v393 = vadd.f32 %v70, %v389
    %v394 = vadd.f32 %v73, %v390
    %v395 = vtanh.pop %v393
    %v396 = vtanh.pop %v394
    %v399 = vrot.slane %v396, 7
    %vm400 = vcmask 1045509
    %v401 = vsel %vm400, %v399, %v395
    %v404 = vrot.slane %v362, 4
    %405 = vrot.lane.b32.xlu0 %v404, 32
    %v406 = vpop.permute.xlu0 %405
    %v408 = vsel %vm91, %v401, %v406
    %v410 = vrot.slane %v408, 4
    %v411 = vsel %vm130, %v410, 0
    %413 = vmatpush.msra.mxu0 0.0
    %414 = vmatpush.msra.mxu0 0.0
    %415 = vmatpush.msra.mxu0 0.0
    %416 = vmatpush.msra.mxu0 0.0
    %417 = vmatpush.msra.mxu0 0.0
    %418 = vmatpush.msra.mxu0 0.0
    %419 = vmatpush.msra.mxu0 0.0
    %420 = vmatpush.msra.mxu0 0.0
    %421 = vmatpush.msra.mxu0 %v86
    %422 = vmatpush.msra.mxu0 %v85
    %423 = vmatpush.msra.mxu0 %v84
    %424 = vmatpush.msra.mxu0 %v83
    %425 = vmatpush.msra.mxu0 %v82
    %426 = vmatpush.msra.mxu0 %v81
    %427 = vmatpush.msra.mxu0 %v80
    %428 = vmatpush.msra.mxu0 %v79
    %429 = vmatmul.f32.gmra.mxu0 %v411
    %v430 = vpop.f32.mrf.mxu0
    %v431 = vadd.f32 %v89, %v430
    %432 = vdwg.mxu0
    %v433 = vtanh.pop %v431
    %v434 = vrot.slane %v395, 4
    %v435 = vrot.slane %v396, 3
    %v436 = vsel %vm126, %v435, %v434
    %v437 = vsel %vm91, %v436, 0
    %439 = vmatpush.msra.mxu0 0.0
    %440 = vmatpush.msra.mxu0 0.0
    %441 = vmatpush.msra.mxu0 0.0
    %442 = vmatpush.msra.mxu0 0.0
    %443 = vmatpush.msra.mxu0 0.0
    %444 = vmatpush.msra.mxu0 0.0
    %445 = vmatpush.msra.mxu0 0.0
    %446 = vmatpush.msra.mxu0 0.0
    %447 = vmatpush.msra.mxu0 0.0
    %448 = vmatpush.msra.mxu0 0.0
    %449 = vmatpush.msra.mxu0 0.0
    %450 = vmatpush.msra.mxu0 0.0
    %451 = vmatpush.msra.mxu0 %v78
    %452 = vmatpush.msra.mxu0 %v77
    %453 = vmatpush.msra.mxu0 %v76
    %454 = vmatpush.msra.mxu0 %v75
    %455 = vmatmul.f32.gmra.mxu0 %v437
    %v456 = vpop.f32.mrf.mxu0
    %v457 = vadd.f32 0.0, %v456
    %458 = vdwg.mxu0
    %v460 = vrot.slane %v457, 3
    %v461 = vrot.slane %v457, 4
    %v464 = vadd.f32 %v70, %v460
    %v465 = vadd.f32 %v73, %v461
    %v466 = vtanh.pop %v464
    %v467 = vtanh.pop %v465
    %v470 = vrot.slane %v467, 7
    %vm471 = vcmask 1046534
    %v472 = vsel %vm471, %v470, %v466
    %v475 = vrot.slane %v433, 3
    %476 = vrot.lane.b32.xlu0 %v475, 32
    %v477 = vpop.permute.xlu0 %476
    %v479 = vsel %vm91, %v472, %v477
    %v481 = vrot.slane %v479, 5
    %v482 = vsel %vm130, %v481, 0
    %484 = vmatpush.msra.mxu0 0.0
    %485 = vmatpush.msra.mxu0 0.0
    %486 = vmatpush.msra.mxu0 0.0
    %487 = vmatpush.msra.mxu0 0.0
    %488 = vmatpush.msra.mxu0 0.0
    %489 = vmatpush.msra.mxu0 0.0
    %490 = vmatpush.msra.mxu0 0.0
    %491 = vmatpush.msra.mxu0 0.0
    %492 = vmatpush.msra.mxu0 %v86
    %493 = vmatpush.msra.mxu0 %v85
    %494 = vmatpush.msra.mxu0 %v84
    %495 = vmatpush.msra.mxu0 %v83
    %496 = vmatpush.msra.mxu0 %v82
    %497 = vmatpush.msra.mxu0 %v81
    %498 = vmatpush.msra.mxu0 %v80
    %499 = vmatpush.msra.mxu0 %v79
    %500 = vmatmul.f32.gmra.mxu0 %v482
    %v501 = vpop.f32.mrf.mxu0
    %v502 = vadd.f32 %v89, %v501
    %503 = vdwg.mxu0
    %v504 = vtanh.pop %v502
    %v505 = vrot.slane %v466, 5
    %v506 = vrot.slane %v467, 4
    %v507 = vsel %vm126, %v506, %v505
    %v508 = vsel %vm91, %v507, 0
    %510 = vmatpush.msra.mxu0 0.0
    %511 = vmatpush.msra.mxu0 0.0
    %512 = vmatpush.msra.mxu0 0.0
    %513 = vmatpush.msra.mxu0 0.0
    %514 = vmatpush.msra.mxu0 0.0
    %515 = vmatpush.msra.mxu0 0.0
    %516 = vmatpush.msra.mxu0 0.0
    %517 = vmatpush.msra.mxu0 0.0
    %518 = vmatpush.msra.mxu0 0.0
    %519 = vmatpush.msra.mxu0 0.0
    %520 = vmatpush.msra.mxu0 0.0
    %521 = vmatpush.msra.mxu0 0.0
    %522 = vmatpush.msra.mxu0 %v78
    %523 = vmatpush.msra.mxu0 %v77
    %524 = vmatpush.msra.mxu0 %v76
    %525 = vmatpush.msra.mxu0 %v75
    %526 = vmatmul.f32.gmra.mxu0 %v508
    %v527 = vpop.f32.mrf.mxu0
    %v528 = vadd.f32 0.0, %v527
    %529 = vdwg.mxu0
    %v531 = vrot.slane %v528, 2
    %v532 = vrot.slane %v528, 3
    %v535 = vadd.f32 %v70, %v531
    %v536 = vadd.f32 %v73, %v532
    %v537 = vtanh.pop %v535
    %v538 = vtanh.pop %v536
    %v541 = vrot.slane %v538, 7
    %vm542 = vcmask 1047559
    %v543 = vsel %vm542, %v541, %v537
    %v546 = vrot.slane %v504, 2
    %547 = vrot.lane.b32.xlu0 %v546, 32
    %v548 = vpop.permute.xlu0 %547
    %v550 = vsel %vm91, %v543, %v548
    %v552 = vrot.slane %v550, 6
    %v553 = vsel %vm130, %v552, 0
    %555 = vmatpush.msra.mxu0 0.0
    %556 = vmatpush.msra.mxu0 0.0
    %557 = vmatpush.msra.mxu0 0.0
    %558 = vmatpush.msra.mxu0 0.0
    %559 = vmatpush.msra.mxu0 0.0
    %560 = vmatpush.msra.mxu0 0.0
    %561 = vmatpush.msra.mxu0 0.0
    %562 = vmatpush.msra.mxu0 0.0
    %563 = vmatpush.msra.mxu0 %v86
    %564 = vmatpush.msra.mxu0 %v85
    %565 = vmatpush.msra.mxu0 %v84
    %566 = vmatpush.msra.mxu0 %v83
    %567 = vmatpush.msra.mxu0 %v82
    %568 = vmatpush.msra.mxu0 %v81
    %569 = vmatpush.msra.mxu0 %v80
    %570 = vmatpush.msra.mxu0 %v79
    %571 = vmatmul.f32.gmra.mxu0 %v553
    %v572 = vpop.f32.mrf.mxu0
    %v573 = vadd.f32 %v89, %v572
    %574 = vdwg.mxu0
    %v575 = vtanh.pop %v573
    %v576 = vrot.slane %v537, 6
    %v577 = vrot.slane %v538, 5
    %v578 = vsel %vm126, %v577, %v576
    %v579 = vsel %vm91, %v578, 0
    %581 = vmatpush.msra.mxu0 0.0
    %582 = vmatpush.msra.mxu0 0.0
    %583 = vmatpush.msra.mxu0 0.0
    %584 = vmatpush.msra.mxu0 0.0
    %585 = vmatpush.msra.mxu0 0.0
    %586 = vmatpush.msra.mxu0 0.0
    %587 = vmatpush.msra.mxu0 0.0
    %588 = vmatpush.msra.mxu0 0.0
    %589 = vmatpush.msra.mxu0 0.0
    %590 = vmatpush.msra.mxu0 0.0
    %591 = vmatpush.msra.mxu0 0.0
    %592 = vmatpush.msra.mxu0 0.0
    %593 = vmatpush.msra.mxu0 %v78
    %594 = vmatpush.msra.mxu0 %v77
    %595 = vmatpush.msra.mxu0 %v76
    %596 = vmatpush.msra.mxu0 %v75
    %597 = vmatmul.f32.gmra.mxu0 %v579
    %v598 = vpop.f32.mrf.mxu0
    %v599 = vadd.f32 0.0, %v598
    %600 = vdwg.mxu0
    %v602 = vrot.slane %v599, 1
    %v603 = vrot.slane %v599, 2
    %v606 = vadd.f32 %v70, %v602
    %v607 = vadd.f32 %v73, %v603
    %v608 = vtanh.pop %v606
    %v609 = vtanh.pop %v607
    %v612 = vrot.slane %v609, 7
    %v616 = vrot.slane %v575, 1
    %617 = vrot.lane.b32.xlu0 %v616, 32
    %v618 = vpop.permute.xlu0 %617
    %v620 = vsel %vm91, %v608, %v618
    %v621 = vsel %vm91, %v612, %v618
    %vm624 = vcmask 1040384
    %v625 = vrot.slane %v620, 7
    %v626 = vrot.slane %v621, 7
    %v627 = vsel %vm624, %v625, %v626
    %v628 = vsel %vm130, %v627, 0
    %630 = vmatpush.msra.mxu0 0.0
    %631 = vmatpush.msra.mxu0 0.0
    %632 = vmatpush.msra.mxu0 0.0
    %633 = vmatpush.msra.mxu0 0.0
    %634 = vmatpush.msra.mxu0 0.0
    %635 = vmatpush.msra.mxu0 0.0
    %636 = vmatpush.msra.mxu0 0.0
    %637 = vmatpush.msra.mxu0 0.0
    %638 = vmatpush.msra.mxu0 %v86
    %639 = vmatpush.msra.mxu0 %v85
    %640 = vmatpush.msra.mxu0 %v84
    %641 = vmatpush.msra.mxu0 %v83
    %642 = vmatpush.msra.mxu0 %v82
    %643 = vmatpush.msra.mxu0 %v81
    %644 = vmatpush.msra.mxu0 %v80
    %645 = vmatpush.msra.mxu0 %v79
    %646 = vmatmul.f32.gmra.mxu0 %v628
    %v647 = vpop.f32.mrf.mxu0
    %v648 = vadd.f32 %v89, %v647
    %649 = vdwg.mxu0
    %v650 = vtanh.pop %v648
    %v651 = vld [vmem:[%s6] sm:$0xff]
    %v652 = vld [vmem:[%s6 + $0x8] sm:$0xff]
    %v653 = vld [vmem:[%s6 + $0x10] sm:$0xff]
    %v654 = vld [vmem:[%s6 + $0x18] sm:$0xff]
    %v655 = vld [vmem:[%s7] sm:$0x1]
    %v657 = vperm.slane %v655, 0
    %v660 = vsel %vm91, %v650, 0
    %662 = vmatpush.msra.mxu0 0.0
    %663 = vmatpush.msra.mxu0 0.0
    %664 = vmatpush.msra.mxu0 0.0
    %665 = vmatpush.msra.mxu0 0.0
    %666 = vmatpush.msra.mxu0 0.0
    %667 = vmatpush.msra.mxu0 0.0
    %668 = vmatpush.msra.mxu0 0.0
    %669 = vmatpush.msra.mxu0 0.0
    %670 = vmatpush.msra.mxu0 0.0
    %671 = vmatpush.msra.mxu0 0.0
    %672 = vmatpush.msra.mxu0 0.0
    %673 = vmatpush.msra.mxu0 0.0
    %674 = vmatpush.msra.mxu0 %v654
    %675 = vmatpush.msra.mxu0 %v653
    %676 = vmatpush.msra.mxu0 %v652
    %677 = vmatpush.msra.mxu0 %v651
    %678 = vmatmul.f32.gmra.mxu0 %v660
    %v679 = vpop.f32.mrf.mxu0
    %v680 = vadd.f32 %v657, %v679
    %681 = vdwg.mxu0
    %v682 = vsub.f32 0.0, %v680
    %v683 = vmul.f32 %v682, 1.442695
    %v684 = vpow.pop %v683
    %v685 = vadd.f32 %v684, 1.0
    %v686 = vrcp.pop %v685
    %v687 = vmul.f32 %v680, %v686
    %v688 = vld [vmem:[%s8] sm:$0xff]
    %v689 = vld [vmem:[%s8 + $0x8] sm:$0xff]
    %v690 = vld [vmem:[%s8 + $0x10] sm:$0xff]
    %v691 = vld [vmem:[%s8 + $0x18] sm:$0xff]
    %v692 = vld [vmem:[%s8 + $0x20] sm:$0xff]
    %v693 = vld [vmem:[%s8 + $0x28] sm:$0xff]
    %v694 = vld [vmem:[%s8 + $0x30] sm:$0xff]
    %v695 = vld [vmem:[%s8 + $0x38] sm:$0xff]
    %v696 = vld [vmem:[%s9] sm:$0x1]
    %v698 = vperm.slane %v696, 0
    %v701 = vsel %vm130, %v687, 0
    %703 = vmatpush.msra.mxu0 0.0
    %704 = vmatpush.msra.mxu0 0.0
    %705 = vmatpush.msra.mxu0 0.0
    %706 = vmatpush.msra.mxu0 0.0
    %707 = vmatpush.msra.mxu0 0.0
    %708 = vmatpush.msra.mxu0 0.0
    %709 = vmatpush.msra.mxu0 0.0
    %710 = vmatpush.msra.mxu0 0.0
    %711 = vmatpush.msra.mxu0 %v695
    %712 = vmatpush.msra.mxu0 %v694
    %713 = vmatpush.msra.mxu0 %v693
    %714 = vmatpush.msra.mxu0 %v692
    %715 = vmatpush.msra.mxu0 %v691
    %716 = vmatpush.msra.mxu0 %v690
    %717 = vmatpush.msra.mxu0 %v689
    %718 = vmatpush.msra.mxu0 %v688
    %719 = vmatmul.f32.gmra.mxu0 %v701
    %v720 = vpop.f32.mrf.mxu0
    %v721 = vadd.f32 %v698, %v720
    %722 = vdwg.mxu0
    %vm723 = vcmask 58368
    %724 = vst.msk [vmem:[#allocation2] sm:$0x3] %vm723, %v721
    // Predicated region
    $region42: #{tpu_custom_call.1} parent=1 // pred_check
      _
    $region43: #{tpu_custom_call.1} parent=1 // pred_check_branch
      %726 = sbr.rel (0) target = $region45
    $region44: #{tpu_custom_call.1} parent=1 // pred_region
      %728 = vsyncadd [#allocation3], 0
      %s730 = sshll.u32 [#allocation2], 4
      %s731 = int_to_ptr.vmem [resolvable:$true] %s730
      %s732 = sshll.u32 %s10, 4
      %s733 = int_to_ptr.hbm [resolvable:$true] %s732
      %735 = dma.vmem_to_hbm [thread:$0]  %s731, 32, %s733, [#allocation3]
    $region45: #{tpu_custom_call.1} parent=1 // pred_fallthru
      _
    // Predicated region
    $region46: #{tpu_custom_call.1} parent=1 // pred_check
      _
    $region47: #{tpu_custom_call.1} parent=1 // pred_check_branch
      %737 = sbr.rel (0) target = $region49
    $region48: #{tpu_custom_call.1} parent=1 // pred_region
      %739 = dma.done [#allocation3], 32
    $region49: #{tpu_custom_call.1} parent=1 // pred_fallthru
      _
    %740 = vsyncpa [#allocation3], 1

</llo_original>
